<compile_context>
chip_gen: v7x
topology: tpu7x:2x2x1
jax: 0.10.0
libtpu: 0.0.40
codegen_flags: <defaults>
</compile_context>

<pallas_src>
import functools

import jax
import jax.numpy as jnp
from jax.experimental import pallas as pl
from jax.experimental.pallas import tpu as pltpu


def _round_up(x, m):
    return (x + m - 1) // m * m


def _pick_tile(dim, pref, align):
    """Largest tile <= pref (multiple of `align`) dividing round_up(dim, align)."""
    padded = _round_up(dim, align)
    if padded <= pref:
        return padded
    t = (pref // align) * align
    while t > align and padded % t != 0:
        t -= align
    return max(t, align)


def _device_vmem_bytes():
    try:
        return int(pltpu.get_tpu_info().vmem_capacity_bytes)
    except Exception:  # interpret mode / older runtimes
        return 64 << 20  # assume the most constrained generation (v7x per-core)


def _fc_layer1_kernel(x_ref, w_ref, b_ref, o_ref, acc_ref, act_ref, *,
                      tk, keep_prob, seed, use_activation):
    """grid = (M tiles, N tiles, K tiles); K innermost (reduction axis).

    x_ref is the full-K strip (tm, D_in_p) of batch tile i; its block index is
    constant in (j, k) so it is DMA'd only when i changes.  act_ref caches
    tanh(dropout(x)) per K tile in the MXU operand dtype, filled on the first
    N pass (j == 0) and reused for every other N tile, so EUP/VPU work (and
    the dropout mask) does not scale with / vary across D_out.
    """
    i = pl.program_id(0)
    j = pl.program_id(1)
    k = pl.program_id(2)
    nk = pl.num_programs(2)

    @pl.when(j == 0)
    def _fill_act_cache():
        col = pl.multiple_of(k * tk, tk)
        xv = x_ref[:, pl.ds(col, tk)].astype(jnp.float32)
        if keep_prob < 1.0:
            # Inverted dropout, deterministic per (i, k) tile.
            # TODO(synk): dropout path is implemented but not exercised by the
            # rate=0.0 demo; its mask differs from the jax.random XLA fallback.
            pltpu.prng_seed(seed + i * nk + k)
            bits = pltpu.bitcast(pltpu.prng_random_bits(xv.shape), jnp.uint32)
            u = (bits >> 8).astype(jnp.float32) * (1.0 / (1 << 24))
            xv = jnp.where(u < keep_prob, xv * (1.0 / keep_prob), 0.0)
        if use_activation:
            xv = jnp.tanh(xv)                 # f32 tanh (v5e EUP has no bf16)
        act_ref[k] = xv.astype(act_ref.dtype)

    # MXU matmul in the operand dtype with f32 accumulation.
    prod = jnp.dot(act_ref[k], w_ref[...], preferred_element_type=jnp.float32)

    @pl.when(k == 0)
    def _first():
        acc_ref[...] = prod               # write-through: no zero-init + add

    @pl.when(k > 0)
    def _accumulate():
        acc_ref[...] += prod

    @pl.when(k == nk - 1)
    def _finalize():
        o_ref[...] = (acc_ref[...] +
                      b_ref[...].astype(jnp.float32)).astype(o_ref.dtype)


def _fc_layer1_xla(x, w, b, *, dropout_rate, training, use_activation, seed):
    """Plain fused-XLA path for shapes too small to amortize a pallas_call."""
    if training and dropout_rate > 0.0:
        keep = 1.0 - float(dropout_rate)
        mask = jax.random.bernoulli(jax.random.PRNGKey(seed), keep, x.shape)
        x = jnp.where(mask, x / keep, 0.0).astype(x.dtype)
    h = jnp.tanh(x.astype(jnp.float32)) if use_activation else x.astype(jnp.float32)
    y = jnp.dot(h.astype(w.dtype), w, preferred_element_type=jnp.float32)
    return (y + b.reshape(1, -1).astype(jnp.float32)).astype(x.dtype)


def fc_layer1(x, w, b, *, dropout_rate=0.0, training=False, use_activation=True,
              seed=0, tm=512, tn=512, tk=512, w_buffers=2, use_pallas=None):
    """x: [B, D_in], w: [D_in, D_out], b: [D_out] or [1, D_out] -> [B, D_out]."""
    B, D_in = x.shape
    assert w.shape[0] == D_in
    D_out = w.shape[1]
    b2 = b.reshape(1, D_out)

    if use_pallas is None:
        # Below ~one MXU tile of work, launch + per-grid-step overhead wins.
        use_pallas = (B >= 256 and D_out >= 128 and D_in >= 128)
    if not use_pallas:
        return _fc_layer1_xla(x, w, b2, dropout_rate=dropout_rate,
                              training=training, use_activation=use_activation,
                              seed=seed)

    out_dtype = x.dtype
    op_dtype = w.dtype                        # MXU operand / act-cache dtype
    isz = lambda dt: jnp.dtype(dt).itemsize
    # Stream x through HBM in the narrower of (x, W) dtypes: halves x traffic
    # and VMEM footprint when W is bf16, never widens an already-narrow x.
    x_stream_dtype = x.dtype if isz(x.dtype) <= isz(op_dtype) else op_dtype

    # ---- Tile selection ----------------------------------------------------
    # tm: as big as possible (W HBM traffic scales with the number of batch
    # passes = Bp/tm); tn/tk: divisors of the 128-aligned dims so W/b need no
    # per-call padding copy.  (With a single batch tile v7x megacore idles one
    # core, but splitting M would double W HBM traffic on a mem-bound kernel.)
    tm = min(tm, _round_up(B, 8))
    tn = _pick_tile(D_out, tn, 128)
    tk = _pick_tile(D_in, tk, 128)
    Dinp = _round_up(D_in, tk)
    Doutp = _round_up(D_out, tn)

    # ---- VMEM budget: keep the K-resident x strip + activation cache small
    # enough for v7x's 64 MiB while leaving room for W (double-)buffering. ----
    phys_vmem = _device_vmem_bytes()
    budget = max(phys_vmem - (16 << 20), 24 << 20)

    def _vmem_bytes(tm_):
        return (2 * tm_ * Dinp * isz(x_stream_dtype)   # x strip (double-buffered)
                + tm_ * Dinp * isz(op_dtype)           # activation cache
                + w_buffers * tk * tn * isz(op_dtype)  # W buffers
                + 2 * tn * isz(b2.dtype)               # bias
                + 2 * tm_ * tn * isz(out_dtype)        # output (double-buffered)
                + tm_ * tn * 4)                        # f32 accumulator

    while _vmem_bytes(tm) > budget and tm > 64:
        tm = max(64, _round_up(tm // 2, 8))
    if _vmem_bytes(tm) > budget:
        # TODO(synk): D_in too large for the K-resident activation cache even
        # at tm=64; a K-superblocked variant would be needed — fall back.
        return _fc_layer1_xla(x, w, b2, dropout_rate=dropout_rate,
                              training=training, use_activation=use_activation,
                              seed=seed)

    Bp = _round_up(B, tm)
    nk = Dinp // tk

    # ---- Pad / cast (skipped entirely when shapes already align; for repeated
    # inference calls weights should be pre-padded once at parameter setup). --
    xp = x.astype(x_stream_dtype)
    if (Bp, Dinp) != (B, D_in):
        # Zero padding is exact: tanh(0) = 0 and padded W rows/cols are zero.
        xp = jnp.pad(xp, ((0, Bp - B), (0, Dinp - D_in)))
    wp = w if (Dinp, Doutp) == (D_in, D_out) else jnp.pad(
        w, ((0, Dinp - D_in), (0, Doutp - D_out)))
    bp = b2 if Doutp == D_out else jnp.pad(b2, ((0, 0), (0, Doutp - D_out)))

    keep_prob = (1.0 - float(dropout_rate)) if training else 1.0
    kernel = functools.partial(_fc_layer1_kernel, tk=tk, keep_prob=keep_prob,
                               seed=int(seed),
                               use_activation=bool(use_activation))

    vmem_limit = int(min(max(_vmem_bytes(tm) + (4 << 20), 32 << 20),
                         max(phys_vmem - (2 << 20), 32 << 20)))

    w_spec_kwargs = {} if w_buffers == 2 else {"pipeline_mode": pl.Buffered(w_buffers)}
    w_spec = pl.BlockSpec((tk, tn), lambda i, j, k: (k, j), **w_spec_kwargs)

    out_p = pl.pallas_call(
        kernel,
        out_shape=jax.ShapeDtypeStruct((Bp, Doutp), out_dtype),
        grid_spec=pltpu.PrefetchScalarGridSpec(
            num_scalar_prefetch=0,
            grid=(Bp // tm, Doutp // tn, nk),
            in_specs=[
                # Full-K strip; block index constant in (j, k) -> the pipeline
                # DMAs each x strip exactly once per batch tile.
                pl.BlockSpec((tm, Dinp), lambda i, j, k: (i, 0)),
                w_spec,                                          # W tile (k, j)
                pl.BlockSpec((1, tn), lambda i, j, k: (0, j)),   # bias
            ],
            out_specs=pl.BlockSpec((tm, tn), lambda i, j, k: (i, j)),
            scratch_shapes=[
                pltpu.VMEM((tm, tn), jnp.float32),       # f32 accumulator
                pltpu.VMEM((nk, tm, tk), op_dtype),      # tanh(dropout(x)) cache
            ]),
        compiler_params=pltpu.CompilerParams(
            # Batch axis parallel (v7x megacore shards it when Bp//tm >= 2);
            # N must stay "arbitrary" because the activation cache is filled on
            # the j==0 pass; K is the reduction axis and goes last.
            dimension_semantics=("parallel", "arbitrary", "arbitrary"),
            vmem_limit_bytes=vmem_limit),
    )(xp, wp, bp)

    return out_p[:B, :D_out]


def _reference(x, w, b, use_activation=True):
    h = jnp.tanh(x) if use_activation else x
    return h @ w + b.reshape(1, -1)


if __name__ == "__main__":
    # --- Case 1: toy shapes implied by the module (batch=8, 32 -> 16). ------
    k_x, k_w, k_b = jax.random.split(jax.random.PRNGKey(0), 3)
    batch, input_dim, output_dim = 8, 32, 16
    x = jax.random.normal(k_x, (batch, input_dim), dtype=jnp.float32)
    bound = 1.0 / (input_dim ** 0.5)              # nn.Linear default init range
    w = jax.random.uniform(k_w, (input_dim, output_dim), dtype=jnp.float32,
                           minval=-bound, maxval=bound)
    b = jax.random.uniform(k_b, (output_dim,), dtype=jnp.float32,
                           minval=-bound, maxval=bound)

    out = jax.block_until_ready(fc_layer1(x, w, b, use_pallas=True))
    ref = _reference(x, w, b)
    assert out.shape == (batch, output_dim)
    assert jnp.allclose(out, ref, atol=1e-5, rtol=1e-5), "case 1 mismatch"

    # --- Case 2: multi-tile run exercising the (M, N, K) grid, the resident
    # x strip (reused across j and k), first-write/accumulate/finalize of the
    # accumulator, and activation-cache reuse for j > 0. ----------------------
    k_x2, k_w2, k_b2 = jax.random.split(jax.random.PRNGKey(1), 3)
    B2, Din2, Dout2 = 16, 256, 256
    x2 = jax.random.normal(k_x2, (B2, Din2), dtype=jnp.float32)
    bound2 = 1.0 / (Din2 ** 0.5)
    w2 = jax.random.uniform(k_w2, (Din2, Dout2), dtype=jnp.float32,
                            minval=-bound2, maxval=bound2)
    b2 = jax.random.uniform(k_b2, (Dout2,), dtype=jnp.float32,
                            minval=-bound2, maxval=bound2)

    out2 = jax.block_until_ready(
        fc_layer1(x2, w2, b2, use_pallas=True, tm=8, tn=128, tk=128))
    ref2 = _reference(x2, w2, b2)
    assert out2.shape == (B2, Dout2)
    assert jnp.allclose(out2, ref2, atol=1e-4, rtol=1e-4), "case 2 mismatch"

    # --- Case 3: use_activation=False path (dropout -> linear only). ---------
    out3 = jax.block_until_ready(
        fc_layer1(x, w, b, use_activation=False, use_pallas=True))
    ref3 = _reference(x, w, b, use_activation=False)
    assert jnp.allclose(out3, ref3, atol=1e-5, rtol=1e-5), "case 3 mismatch"

    print("KERNEL_OK")
</pallas_src>

<mosaic_0001>
module attributes {stable_mosaic.version = 11 : i64} {
  func.func @_fc_layer1_kernel(%arg0: i32, %arg1: i32, %arg2: i32, %arg3: memref<8x128xf32, #tpu.memory_space<vmem>>, %arg4: memref<128x128xf32, #tpu.memory_space<vmem>>, %arg5: memref<1x128xf32, #tpu.memory_space<vmem>>, %arg6: memref<8x128xf32, #tpu.memory_space<vmem>>, %arg7: memref<8x128xf32, #tpu.memory_space<vmem>>, %arg8: memref<1x8x128xf32, #tpu.memory_space<vmem>>) attributes {dimension_semantics = [#tpu.dimension_semantics<parallel>, #tpu.dimension_semantics<arbitrary>, #tpu.dimension_semantics<arbitrary>], iteration_bounds = array<i64: 1, 1, 1>, scalar_prefetch = 0 : i64, scratch_operands = 2 : i64, tpu.core_type = #tpu.core_type<tc>, window_params = [{transform_indices = @transform_0, window_bounds = array<i64: 8, 128>}, {transform_indices = @transform_1, window_bounds = array<i64: 128, 128>}, {transform_indices = @transform_2, window_bounds = array<i64: 1, 128>}, {transform_indices = @transform_3, window_bounds = array<i64: 8, 128>}]} {
    %c0_i32 = arith.constant 0 : i32
    %0 = arith.cmpi eq, %arg1, %c0_i32 : i32
    %1 = arith.extui %0 : i1 to i32
    %c0_i32_0 = arith.constant 0 : i32
    %2 = arith.cmpi ne, %1, %c0_i32_0 : i32
    scf.if %2 {
      %c128_i32 = arith.constant 128 : i32
      %17 = arith.muli %arg2, %c128_i32 : i32
      %18 = tpu.assume_multiple %17, 128 : i32
      %c0_10 = arith.constant 0 : index
      %19 = arith.index_cast %18 : i32 to index
      %20 = vector.load %arg3[%c0_10, %19] : memref<8x128xf32, #tpu.memory_space<vmem>>, vector<8x128xf32>
      %21 = math.tanh %20 : vector<8x128xf32>
      %22 = arith.index_cast %arg2 : i32 to index
      %c0_11 = arith.constant 0 : index
      %c0_12 = arith.constant 0 : index
      %23 = vector.load %arg8[%22, %c0_11, %c0_12] : memref<1x8x128xf32, #tpu.memory_space<vmem>>, vector<1x8x128xf32>
      %24 = vector.shape_cast %23 : vector<1x8x128xf32> to vector<8x128xf32>
      %25 = vector.shape_cast %21 : vector<8x128xf32> to vector<1x8x128xf32>
      tpu.vector_store %arg8[%22, %c0_11, %c0_12], %25 {strides = array<i32>} : memref<1x8x128xf32, #tpu.memory_space<vmem>>, vector<1x8x128xf32>,
    } else {
    }
    %3 = arith.index_cast %arg2 : i32 to index
    %c0 = arith.constant 0 : index
    %c0_1 = arith.constant 0 : index
    %4 = vector.load %arg8[%3, %c0, %c0_1] : memref<1x8x128xf32, #tpu.memory_space<vmem>>, vector<1x8x128xf32>
    %5 = vector.shape_cast %4 : vector<1x8x128xf32> to vector<8x128xf32>
    %c0_2 = arith.constant 0 : index
    %c0_3 = arith.constant 0 : index
    %6 = vector.load %arg4[%c0_2, %c0_3] : memref<128x128xf32, #tpu.memory_space<vmem>>, vector<128x128xf32>
    %cst = arith.constant dense<0.000000e+00> : vector<8x128xf32>
    %7 = tpu.matmul %5, %6, %cst {dimension_numbers = #tpu.dot_dimension_numbers<[1], [0], [0], [1], [0, 0, 1, 1], [], []>} : vector<8x128xf32>, vector<128x128xf32>, vector<8x128xf32> -> vector<8x128xf32>
    %c0_i32_4 = arith.constant 0 : i32
    %8 = arith.cmpi eq, %arg2, %c0_i32_4 : i32
    %9 = arith.extui %8 : i1 to i32
    %c0_i32_5 = arith.constant 0 : i32
    %10 = arith.cmpi ne, %9, %c0_i32_5 : i32
    scf.if %10 {
      %c0_10 = arith.constant 0 : index
      %c0_11 = arith.constant 0 : index
      %17 = vector.load %arg7[%c0_10, %c0_11] : memref<8x128xf32, #tpu.memory_space<vmem>>, vector<8x128xf32>
      tpu.vector_store %arg7[%c0_10, %c0_11], %7 {strides = array<i32>} : memref<8x128xf32, #tpu.memory_space<vmem>>, vector<8x128xf32>,
    } else {
    }
    %c0_i32_6 = arith.constant 0 : i32
    %11 = arith.cmpi sgt, %arg2, %c0_i32_6 : i32
    %12 = arith.extui %11 : i1 to i32
    %c0_i32_7 = arith.constant 0 : i32
    %13 = arith.cmpi ne, %12, %c0_i32_7 : i32
    scf.if %13 {
      %c0_10 = arith.constant 0 : index
      %c0_11 = arith.constant 0 : index
      %17 = vector.load %arg7[%c0_10, %c0_11] : memref<8x128xf32, #tpu.memory_space<vmem>>, vector<8x128xf32>
      %18 = arith.addf %17, %7 : vector<8x128xf32>
      %c0_12 = arith.constant 0 : index
      %c0_13 = arith.constant 0 : index
      %19 = vector.load %arg7[%c0_12, %c0_13] : memref<8x128xf32, #tpu.memory_space<vmem>>, vector<8x128xf32>
      tpu.vector_store %arg7[%c0_12, %c0_13], %18 {strides = array<i32>} : memref<8x128xf32, #tpu.memory_space<vmem>>, vector<8x128xf32>,
    } else {
    }
    %c0_i32_8 = arith.constant 0 : i32
    %14 = arith.cmpi eq, %arg2, %c0_i32_8 : i32
    %15 = arith.extui %14 : i1 to i32
    %c0_i32_9 = arith.constant 0 : i32
    %16 = arith.cmpi ne, %15, %c0_i32_9 : i32
    scf.if %16 {
      %c0_10 = arith.constant 0 : index
      %c0_11 = arith.constant 0 : index
      %17 = vector.load %arg7[%c0_10, %c0_11] : memref<8x128xf32, #tpu.memory_space<vmem>>, vector<8x128xf32>
      %c0_12 = arith.constant 0 : index
      %c0_13 = arith.constant 0 : index
      %18 = vector.load %arg5[%c0_12, %c0_13] : memref<1x128xf32, #tpu.memory_space<vmem>>, vector<1x128xf32>
      %19 = vector.broadcast %18 : vector<1x128xf32> to vector<8x128xf32>
      %20 = arith.addf %17, %19 : vector<8x128xf32>
      %c0_14 = arith.constant 0 : index
      %c0_15 = arith.constant 0 : index
      %21 = vector.load %arg6[%c0_14, %c0_15] : memref<8x128xf32, #tpu.memory_space<vmem>>, vector<8x128xf32>
      tpu.vector_store %arg6[%c0_14, %c0_15], %20 {strides = array<i32>} : memref<8x128xf32, #tpu.memory_space<vmem>>, vector<8x128xf32>,
    } else {
    }
    return
  }
  func.func @transform_0(%arg0: i32, %arg1: i32, %arg2: i32) -> (i32, i32) {
    %c0_i32 = arith.constant 0 : i32
    %c0_i32_0 = arith.constant 0 : i32
    return %arg0, %c0_i32 : i32, i32
  }
  func.func @transform_1(%arg0: i32, %arg1: i32, %arg2: i32) -> (i32, i32) {
    %c0_i32 = arith.constant 0 : i32
    return %arg2, %arg1 : i32, i32
  }
  func.func @transform_2(%arg0: i32, %arg1: i32, %arg2: i32) -> (i32, i32) {
    %c0_i32 = arith.constant 0 : i32
    %c0_i32_0 = arith.constant 0 : i32
    return %c0_i32, %arg1 : i32, i32
  }
  func.func @transform_3(%arg0: i32, %arg1: i32, %arg2: i32) -> (i32, i32) {
    %c0_i32 = arith.constant 0 : i32
    return %arg0, %arg1 : i32, i32
  }
}

</mosaic_0001>

<llo_original>
// kernel: tpu_custom_call.1
$region0: #{tpu_custom_call.1}
  #allocation0 [shape = 'u32[]', space=smem, size = 0x4, offset = 0x4, fixed_abs, tag = 'smem constant byte address 0x4 - core index']
  #allocation1 [shape = 'u32[144,128]{1,0:T(1,128)}', space=vmem, size = 0x12000, scoped, tag = 'internal scratch']
  #allocation2 [shape = 'f32[8,128]{1,0:T(8,128)}', space=vmem, size = 0x1000, scoped, tag = 'scratch operand']
  #allocation3 [shape = 'f32[1,8,128]{2,1,0:T(8,128)}', space=vmem, size = 0x1000, scoped, tag = 'scratch operand']
  %s0 = inlined_call_operand.hbm [shape: f32[8,128], index: 0, kind: input, shape index: {}]
  %s1 = inlined_call_operand.hbm [shape: f32[128,128], index: 1, kind: input, shape index: {}]
  %s2 = inlined_call_operand.vmem [shape: f32[1,128], index: 2, kind: input, shape index: {}]
  %s3 = inlined_call_operand.hbm [shape: f32[8,128], index: 3, kind: output, shape index: {}]
  %s4 = sld [smem:[#allocation0]]
  $region46: #{tpu_custom_call.1} parent=0
    _
  %s6 = ssub.s32 1, %s4
  %s7 = scalar_select 0, %s6, %s4
  $region1: #{tpu_custom_call.1} parent=0
    #allocation4 [shape = 'u8[4096]{0}', space=vmem, size = 0x1000, scoped, tag = 'input window, operand 0, single buffered']
    #allocation5 [shape = 's32[1]{0}', space=sflag, size = 0x4, scoped, tag = 'scoped memory for tpu_custom_call.1']
    #allocation6 [shape = 's32[1]{0}', space=sflag, size = 0x4, scoped, tag = 'scoped memory for tpu_custom_call.1']
    #allocation7 [shape = 'u8[65536]{0}', space=vmem, size = 0x10000, scoped, tag = 'input window, operand 1, single buffered']
    #allocation8 [shape = 's32[1]{0}', space=sflag, size = 0x4, scoped, tag = 'scoped memory for tpu_custom_call.1']
    #allocation9 [shape = 'u8[4096]{0}', space=vmem, size = 0x1000, scoped, tag = 'output window, operand 0, single buffered']
    %8 = vsyncpa [#allocation5], 0
    %9 = vsyncpa [#allocation8], 0
    %10 = vsyncpa [#allocation6], 0
    // Predicated region
    $region2: #{tpu_custom_call.1} parent=1 // pred_check
      _
    $region3: #{tpu_custom_call.1} parent=1 // pred_check_branch
      %12 = sbr.rel (0) target = $region5
    $region4: #{tpu_custom_call.1} parent=1 // pred_region
      %s14 = ssub.s32 128, 128
      %15 = vsyncadd [#allocation5], %s14
      %s17 = sshll.u32 [#allocation4], 4
      %s18 = int_to_ptr.vmem [resolvable:$true] %s17
      %20 = dma.hbm_to_vmem [thread:$0]  %s0, 128, %s18, [#allocation5]
    $region5: #{tpu_custom_call.1} parent=1 // pred_fallthru
      _
    // Predicated region
    $region6: #{tpu_custom_call.1} parent=1 // pred_check
      _
    $region7: #{tpu_custom_call.1} parent=1 // pred_check_branch
      %22 = sbr.rel (0) target = $region9
    $region8: #{tpu_custom_call.1} parent=1 // pred_region
      %s24 = ssub.s32 2048, 2048
      %25 = vsyncadd [#allocation8], %s24
      %s26 = sshll.u32 [#allocation7], 4
      %s27 = int_to_ptr.vmem [resolvable:$true] %s26
      %32 = dma.hbm_to_vmem [thread:$0]  %s1, 2048, %s27, [#allocation8], 128, 128, 8
    $region9: #{tpu_custom_call.1} parent=1 // pred_fallthru
      _
    // Predicated region
    $region10: #{tpu_custom_call.1} parent=1 // pred_check
      _
    $region11: #{tpu_custom_call.1} parent=1 // pred_check_branch
      %34 = sbr.rel (0) target = $region13
    $region12: #{tpu_custom_call.1} parent=1 // pred_region
      _
    $region13: #{tpu_custom_call.1} parent=1 // pred_fallthru
      _
    // Predicated region
    $region14: #{tpu_custom_call.1} parent=1 // pred_check
      _
    $region15: #{tpu_custom_call.1} parent=1 // pred_check_branch
      %36 = sbr.rel (0) target = $region17
    $region16: #{tpu_custom_call.1} parent=1 // pred_region
      %37 = dma.done [#allocation5], 128
    $region17: #{tpu_custom_call.1} parent=1 // pred_fallthru
      _
    // Predicated region
    $region18: #{tpu_custom_call.1} parent=1 // pred_check
      _
    $region19: #{tpu_custom_call.1} parent=1 // pred_check_branch
      %39 = sbr.rel (0) target = $region21
    $region20: #{tpu_custom_call.1} parent=1 // pred_region
      %40 = dma.done [#allocation8], 2048
    $region21: #{tpu_custom_call.1} parent=1 // pred_fallthru
      _
    %p41 = scmp.eq.s32.totalorder 0, 0
    // Predicated region
    $region22: #{tpu_custom_call.1} parent=1 // pred_check
      %p42 = pneg %p41
    $region23: #{tpu_custom_call.1} parent=1 // pred_check_branch
      %44 = sbr.rel (%p42) target = $region25
    $region24: #{tpu_custom_call.1} parent=1 // pred_region
      %s45 = smul.u32 0, 128
      %s46 = sshra.s32 %s45, 7
      %s47 = sand.u32 %s45, 127
      %s48 = scalar_lea.vmem [#allocation4], %s46
      %v49 = vld [vmem:[%s48] sm:$0xff]
      %v50 = vtanh.pop %v49
      %s51 = smul.u32 0, 8
      %s52 = scalar_lea.vmem [#allocation3], %s51
      %53 = vst [vmem:[%s52] sm:$0xff] %v50
    $region25: #{tpu_custom_call.1} parent=1 // pred_fallthru
      _
    %s54 = smul.u32 0, 8
    %s55 = scalar_lea.vmem [#allocation3], %s54
    %v56 = vld [vmem:[%s55] sm:$0xff]
    %v57 = vld [vmem:[#allocation7] sm:$0xff]
    %v58 = vld [vmem:[#allocation7 + $0x8] sm:$0xff]
    %v59 = vld [vmem:[#allocation7 + $0x10] sm:$0xff]
    %v60 = vld [vmem:[#allocation7 + $0x18] sm:$0xff]
    %v61 = vld [vmem:[#allocation7 + $0x20] sm:$0xff]
    %v62 = vld [vmem:[#allocation7 + $0x28] sm:$0xff]
    %v63 = vld [vmem:[#allocation7 + $0x30] sm:$0xff]
    %v64 = vld [vmem:[#allocation7 + $0x38] sm:$0xff]
    %v65 = vld [vmem:[#allocation7 + $0x40] sm:$0xff]
    %v66 = vld [vmem:[#allocation7 + $0x48] sm:$0xff]
    %v67 = vld [vmem:[#allocation7 + $0x50] sm:$0xff]
    %v68 = vld [vmem:[#allocation7 + $0x58] sm:$0xff]
    %v69 = vld [vmem:[#allocation7 + $0x60] sm:$0xff]
    %v70 = vld [vmem:[#allocation7 + $0x68] sm:$0xff]
    %v71 = vld [vmem:[#allocation7 + $0x70] sm:$0xff]
    %v72 = vld [vmem:[#allocation7 + $0x78] sm:$0xff]
    %73 = vmatprep.subr.mxu0 0.0
    %74 = vmatpush1.msra.mxu0 %v57
    %75 = vmatprep.subr.mxu0 0.0
    %76 = vmatpush1.msra.mxu0 %v58
    %77 = vmatprep.subr.mxu0 0.0
    %78 = vmatpush1.msra.mxu0 %v59
    %79 = vmatprep.subr.mxu0 0.0
    %80 = vmatpush1.msra.mxu0 %v60
    %81 = vmatprep.subr.mxu0 0.0
    %82 = vmatpush1.msra.mxu0 %v61
    %83 = vmatprep.subr.mxu0 0.0
    %84 = vmatpush1.msra.mxu0 %v62
    %85 = vmatprep.subr.mxu0 0.0
    %86 = vmatpush1.msra.mxu0 %v63
    %87 = vmatprep.subr.mxu0 0.0
    %88 = vmatpush1.msra.mxu0 %v64
    %89 = vmatprep.subr.mxu0 0.0
    %90 = vmatpush1.msra.mxu0 %v65
    %91 = vmatprep.subr.mxu0 0.0
    %92 = vmatpush1.msra.mxu0 %v66
    %93 = vmatprep.subr.mxu0 0.0
    %94 = vmatpush1.msra.mxu0 %v67
    %95 = vmatprep.subr.mxu0 0.0
    %96 = vmatpush1.msra.mxu0 %v68
    %97 = vmatprep.subr.mxu0 0.0
    %98 = vmatpush1.msra.mxu0 %v69
    %99 = vmatprep.subr.mxu0 0.0
    %100 = vmatpush1.msra.mxu0 %v70
    %101 = vmatprep.subr.mxu0 0.0
    %102 = vmatpush1.msra.mxu0 %v71
    %103 = vmatprep.subr.mxu0 0.0
    %104 = vmatpush1.msra.mxu0 %v72
    %105 = vmatprep.subr.mxu0 0.0
    %106 = vmatpush1.msra.mxu0 0.0
    %107 = vmatprep.subr.mxu0 0.0
    %108 = vmatpush1.msra.mxu0 0.0
    %109 = vmatprep.subr.mxu0 0.0
    %110 = vmatpush1.msra.mxu0 0.0
    %111 = vmatprep.subr.mxu0 0.0
    %112 = vmatpush1.msra.mxu0 0.0
    %113 = vmatprep.subr.mxu0 0.0
    %114 = vmatpush1.msra.mxu0 0.0
    %115 = vmatprep.subr.mxu0 0.0
    %116 = vmatpush1.msra.mxu0 0.0
    %117 = vmatprep.subr.mxu0 0.0
    %118 = vmatpush1.msra.mxu0 0.0
    %119 = vmatprep.subr.mxu0 0.0
    %120 = vmatpush1.msra.mxu0 0.0
    %121 = vmatprep.subr.mxu0 0.0
    %122 = vmatpush1.msra.mxu0 0.0
    %123 = vmatprep.subr.mxu0 0.0
    %124 = vmatpush1.msra.mxu0 0.0
    %125 = vmatprep.subr.mxu0 0.0
    %126 = vmatpush1.msra.mxu0 0.0
    %127 = vmatprep.subr.mxu0 0.0
    %128 = vmatpush1.msra.mxu0 0.0
    %129 = vmatprep.subr.mxu0 0.0
    %130 = vmatpush1.msra.mxu0 0.0
    %131 = vmatprep.subr.mxu0 0.0
    %132 = vmatpush1.msra.mxu0 0.0
    %133 = vmatprep.subr.mxu0 0.0
    %134 = vmatpush1.msra.mxu0 0.0
    %135 = vmatprep.subr.mxu0 0.0
    %136 = vmatpush1.msra.mxu0 0.0
    %137 = vmatprep.mubr.f32.mxu0 0.0
    %138 = vmatmul.mubr.f32.gmra.mrb[0].mxu0 %v56
    %v139 = vpop.f32.mrb[0].mxu0
    %v140 = vadd.f32 0.0, %v139
    %v141 = vpop.f32.mrb[0].mxu0
    %142 = vdwg.mxu0
    %p143 = scmp.eq.s32.totalorder 0, 0
    // Predicated region
    $region26: #{tpu_custom_call.1} parent=1 // pred_check
      %p144 = pneg %p143
    $region27: #{tpu_custom_call.1} parent=1 // pred_check_branch
      %146 = sbr.rel (%p144) target = $region29
    $region28: #{tpu_custom_call.1} parent=1 // pred_region
      %147 = vst [vmem:[#allocation2] sm:$0xff] %v140
    $region29: #{tpu_custom_call.1} parent=1 // pred_fallthru
      _
    %p148 = scmp.gt.s32.totalorder 0, 0
    // Predicated region
    $region30: #{tpu_custom_call.1} parent=1 // pred_check
      %p149 = pneg %p148
    $region31: #{tpu_custom_call.1} parent=1 // pred_check_branch
      %151 = sbr.rel (%p149) target = $region33
    $region32: #{tpu_custom_call.1} parent=1 // pred_region
      %v152 = vld [vmem:[#allocation2] sm:$0xff]
      %v153 = vadd.f32 %v152, %v140
      %154 = vst [vmem:[#allocation2] sm:$0xff] %v153
    $region33: #{tpu_custom_call.1} parent=1 // pred_fallthru
      _
    // Predicated region
    $region34: #{tpu_custom_call.1} parent=1 // pred_check
      %p155 = pneg %p143
    $region35: #{tpu_custom_call.1} parent=1 // pred_check_branch
      %157 = sbr.rel (%p155) target = $region37
    $region36: #{tpu_custom_call.1} parent=1 // pred_region
      %v158 = vld [vmem:[#allocation2] sm:$0xff]
      %v159 = vld [vmem:[%s2] sm:$0x1]
      %v161 = vlaneseq
      %v162 = vshrl.u32 %v161, 7
      %v163 = vsub.s32 0, %v162
      %v164 = vrot.slane %v159, %v163
      %v166 = vadd.f32 %v158, %v164
      %167 = vst [vmem:[#allocation9] sm:$0xff] %v166
    $region37: #{tpu_custom_call.1} parent=1 // pred_fallthru
      _
    // Predicated region
    $region38: #{tpu_custom_call.1} parent=1 // pred_check
      _
    $region39: #{tpu_custom_call.1} parent=1 // pred_check_branch
      %169 = sbr.rel (0) target = $region41
    $region40: #{tpu_custom_call.1} parent=1 // pred_region
      %s171 = ssub.s32 128, 128
      %172 = vsyncadd [#allocation6], %s171
      %s174 = sshll.u32 [#allocation9], 4
      %s175 = int_to_ptr.vmem [resolvable:$true] %s174
      %177 = dma.vmem_to_hbm [thread:$0]  %s175, 128, %s3, [#allocation6]
    $region41: #{tpu_custom_call.1} parent=1 // pred_fallthru
      _
    // Predicated region
    $region42: #{tpu_custom_call.1} parent=1 // pred_check
      _
    $region43: #{tpu_custom_call.1} parent=1 // pred_check_branch
      %179 = sbr.rel (0) target = $region45
    $region44: #{tpu_custom_call.1} parent=1 // pred_region
      %180 = dma.done [#allocation6], 128
    $region45: #{tpu_custom_call.1} parent=1 // pred_fallthru
      _
    %181 = vsyncpa [#allocation5], 1
    %182 = vsyncpa [#allocation8], 1
    %183 = vsyncpa [#allocation6], 1

</llo_original>
